<compile_context>
chip_gen: v7x
topology: tpu7x:2x2x1
jax: 0.10.0
libtpu: 0.0.40
codegen_flags: <defaults>
</compile_context>

<pallas_src>
import math
import functools

import jax
import jax.numpy as jnp
from jax.experimental import pallas as pl
from jax.experimental.pallas import tpu as pltpu

EPS = 1e-5


# ----------------------------- Pallas kernel ------------------------------- #
def _shuffle_layer_kernel(x_ref, w_ref, p_ref, o_ref, *, c_out, reps):
    x2d = x_ref[...]                                        # (c_in, t_tile)

    # main branch: grouped 1x1 conv as a dense matmul. The block-diagonal
    # weight already carries the channel-shuffle row permutation AND the BN
    # scale, so only the bias add + ReLU remain. f32 MXU accumulate.
    y = jnp.dot(w_ref[...], x2d, preferred_element_type=jnp.float32)
    y = jnp.maximum(y + p_ref[0], 0.0)                      # (c_out, t_tile)

    # shortcut branch: channel tiling + inference BN, fused residual add,
    # single full lane/sublane-dense store (no per-rep slice stores).
    xf = x2d.astype(jnp.float32)
    if reps > 1:
        xf = jnp.tile(xf, (reps, 1))                        # (reps*c_in, t_tile)
    if xf.shape[0] != c_out:
        xf = xf[:c_out]
    o_ref[...] = (y + xf * p_ref[1] + p_ref[2]).astype(o_ref.dtype)


# --------------------- generation-aware VMEM budgeting --------------------- #
def _default_vmem_budget():
    phys = 64 << 20                       # conservative fallback (v7x-sized)
    try:
        info = pltpu.get_tpu_info()
        phys = int(getattr(info, "vmem_capacity_bytes", phys))
    except Exception:
        pass
    # Use ~half of per-core physical VMEM, minus headroom for compiler scratch:
    # v7x (64 MiB phys) -> ~28 MiB, v5e/v6e (128 MiB phys) -> ~60 MiB.
    return int(min(max(phys // 2 - (4 << 20), 8 << 20), 64 << 20))


# ------------------------------ JAX wrapper -------------------------------- #
def shuffle_layer_forward(x, w_conv, bn, bn_sc, *, groups,
                          t_tile_cap=8192, vmem_budget_bytes=None):
    """x: (B, C_in, T); w_conv: (C_out, C_in//groups, 1) as in nn.Conv1d."""
    B, c_in, T = x.shape
    c_out = w_conv.shape[0]
    cpg_in = c_in // groups
    cpg_out = c_out // groups
    reps = math.ceil(c_out / c_in)

    # ---------------- parameter prep (plain-JAX glue) ---------------- #
    w2d = w_conv[..., 0].astype(jnp.float32)                 # (c_out, cpg_in)
    w_dense = jnp.zeros((c_out, c_in), jnp.float32)          # block-diagonal
    for g in range(groups):
        w_dense = w_dense.at[g * cpg_out:(g + 1) * cpg_out,
                             g * cpg_in:(g + 1) * cpg_in].set(
            w2d[g * cpg_out:(g + 1) * cpg_out])

    # channel shuffle: shuffled[j] = bn(conv(x))[(j % g)*cpg_out + j//g]
    j = jnp.arange(c_out)
    perm = (j % groups) * cpg_out + (j // groups)

    # fold inference BatchNorm: scale into the weight rows, bias stays.
    scale = bn["gamma"] / jnp.sqrt(bn["var"] + EPS)
    bias = bn["beta"] - bn["mean"] * scale
    w_fold = (w_dense * scale[:, None])[perm].astype(x.dtype)    # (c_out, c_in)
    bias_p = bias[perm]                                           # (c_out,)

    sc_scale = bn_sc["gamma"] / jnp.sqrt(bn_sc["var"] + EPS)
    sc_bias = bn_sc["beta"] - bn_sc["mean"] * sc_scale

    # one merged (3, c_out, 1) parameter slab: [main bias | sc scale | sc bias]
    params = jnp.stack([bias_p, sc_scale, sc_bias]).astype(jnp.float32)[..., None]

    # ------------- lane (T) tiling, bounded by a VMEM budget ------------- #
    budget = _default_vmem_budget() if vmem_budget_bytes is None else int(vmem_budget_bytes)
    itemsize = jnp.dtype(x.dtype).itemsize
    # double-buffered x/out slabs + f32 intermediates (y, tiled shortcut, sum)
    per_lane = 2 * (c_in + c_out) * itemsize + (c_in + 3 * c_out) * 4
    fixed = 2 * c_out * c_in * itemsize + 3 * max(c_out, 8) * 128 * 4 + (1 << 20)
    avail = max(budget - fixed, per_lane * 128)
    max_lanes = max(128, (avail // per_lane) // 128 * 128)
    t_tile_cap = max(128, (int(t_tile_cap) // 128) * 128)
    t_full = ((T + 127) // 128) * 128
    t_tile = int(min(t_tile_cap, max_lanes, t_full))
    n_t = pl.cdiv(T, t_tile)                # partial tail block handled by Pallas

    kernel = functools.partial(_shuffle_layer_kernel, c_out=c_out, reps=reps)

    cost = pl.CostEstimate(
        flops=2 * B * c_out * c_in * T,
        transcendentals=0,
        bytes_accessed=(B * c_in * T + B * c_out * T + c_out * c_in) * itemsize,
    )

    return pl.pallas_call(
        kernel,
        out_shape=jax.ShapeDtypeStruct((B, c_out, T), x.dtype),
        grid_spec=pltpu.PrefetchScalarGridSpec(
            num_scalar_prefetch=0,
            grid=(B, n_t),
            in_specs=[
                pl.BlockSpec((pl.Squeezed(), c_in, t_tile),
                             lambda b, t: (b, 0, t)),                 # x tile
                pl.BlockSpec((c_out, c_in), lambda b, t: (0, 0)),     # folded weight
                pl.BlockSpec((3, c_out, 1), lambda b, t: (0, 0, 0)),  # merged params
            ],
            out_specs=pl.BlockSpec((pl.Squeezed(), c_out, t_tile),
                                   lambda b, t: (b, 0, t)),
        ),
        compiler_params=pltpu.CompilerParams(
            dimension_semantics=("parallel", "parallel"),
            vmem_limit_bytes=int(min(budget + (8 << 20), 96 << 20))),
        cost_estimate=cost,
    )(x, w_fold, params)


# ------------------------- pure-JAX reference ------------------------------ #
def shuffle_layer_reference(x, w_conv, bn, bn_sc, *, groups):
    B, c_in, T = x.shape
    c_out = w_conv.shape[0]
    cpg_in = c_in // groups
    cpg_out = c_out // groups

    xg = x.astype(jnp.float32).reshape(B, groups, cpg_in, T)
    wg = w_conv[..., 0].astype(jnp.float32).reshape(groups, cpg_out, cpg_in)
    y = jnp.einsum("goc,bgct->bgot", wg, xg).reshape(B, c_out, T)

    scale = bn["gamma"] / jnp.sqrt(bn["var"] + EPS)
    bias = bn["beta"] - bn["mean"] * scale
    y = jnp.maximum(y * scale[None, :, None] + bias[None, :, None], 0.0)

    if groups > 1:
        y = y.reshape(B, groups, cpg_out, T).transpose(0, 2, 1, 3).reshape(B, c_out, T)

    sc = x.astype(jnp.float32)
    if c_in != c_out:
        reps = math.ceil(c_out / c_in)
        sc = jnp.tile(sc, (1, reps, 1))[:, :c_out]
    s_scale = bn_sc["gamma"] / jnp.sqrt(bn_sc["var"] + EPS)
    s_bias = bn_sc["beta"] - bn_sc["mean"] * s_scale
    sc = sc * s_scale[None, :, None] + s_bias[None, :, None]
    return y + sc


# -------------------------- deterministic params --------------------------- #
def make_params(key, in_features, out_features, groups):
    cpg_in = in_features // groups
    ks = jax.random.split(key, 3)
    bound = 1.0 / math.sqrt(cpg_in)
    w = jax.random.uniform(ks[0], (out_features, cpg_in, 1), jnp.float32, -bound, bound)

    def bn_params(k):
        kk = jax.random.split(k, 4)
        return dict(
            gamma=jax.random.uniform(kk[0], (out_features,), jnp.float32, 0.5, 1.5),
            beta=jax.random.uniform(kk[1], (out_features,), jnp.float32, -0.5, 0.5),
            mean=jax.random.uniform(kk[2], (out_features,), jnp.float32, -0.5, 0.5),
            var=jax.random.uniform(kk[3], (out_features,), jnp.float32, 0.5, 1.5),
        )

    return w, bn_params(ks[1]), bn_params(ks[2])


if __name__ == "__main__":
    # small shapes; T=200 exercises the non-divisible tail block (no pad/crop)
    B, C_IN, C_OUT, GROUPS, T = 2, 16, 32, 4, 200

    key = jax.random.PRNGKey(0)
    kx, kp = jax.random.split(key)
    x = jax.random.normal(kx, (B, C_IN, T), dtype=jnp.float32)
    w_conv, bn, bn_sc = make_params(kp, C_IN, C_OUT, GROUPS)

    ref = shuffle_layer_reference(x, w_conv, bn, bn_sc, groups=GROUPS)

    # 1) small forced tile -> two T tiles, second partial (masked tail store)
    out = shuffle_layer_forward(x, w_conv, bn, bn_sc, groups=GROUPS, t_tile_cap=128)
    out = jax.block_until_ready(out)
    assert out.shape == (B, C_OUT, T) and out.dtype == jnp.float32
    assert jnp.allclose(out, ref, rtol=1e-5, atol=1e-4), "mismatch (tiled T)"

    # 2) default budget-sized tile -> one (padded) T tile
    out2 = jax.block_until_ready(
        shuffle_layer_forward(x, w_conv, bn, bn_sc, groups=GROUPS))
    assert jnp.allclose(out2, ref, rtol=1e-5, atol=1e-4), "mismatch (single tile)"

    # 3) bf16 I/O production path (f32 accumulate/epilogue inside the kernel)
    xb = x.astype(jnp.bfloat16)
    outb = jax.block_until_ready(
        shuffle_layer_forward(xb, w_conv, bn, bn_sc, groups=GROUPS))
    assert outb.dtype == jnp.bfloat16
    assert jnp.allclose(outb.astype(jnp.float32), ref, rtol=5e-2, atol=2.5e-1), \
        "mismatch (bf16 I/O)"

    print("KERNEL_OK")
</pallas_src>

<mosaic_0001>
module attributes {stable_mosaic.version = 11 : i64} {
  func.func @_shuffle_layer_kernel(%arg0: i32, %arg1: i32, %arg2: memref<1x16x128xf32, #tpu.memory_space<vmem>>, %arg3: memref<32x16xf32, #tpu.memory_space<vmem>>, %arg4: memref<3x32x1xf32, #tpu.memory_space<vmem>>, %arg5: memref<1x32x128xf32, #tpu.memory_space<vmem>>) attributes {dimension_semantics = [#tpu.dimension_semantics<parallel>, #tpu.dimension_semantics<parallel>], iteration_bounds = array<i64: 2, 2>, scalar_prefetch = 0 : i64, scratch_operands = 0 : i64, tpu.core_type = #tpu.core_type<tc>, window_params = [{transform_indices = @transform_0, window_bounds = array<i64: 1, 16, 128>}, {pipeline_mode = #tpu.pipeline_mode<synchronous>, transform_indices = @transform_1, window_bounds = array<i64: 32, 16>}, {pipeline_mode = #tpu.pipeline_mode<synchronous>, transform_indices = @transform_2, window_bounds = array<i64: 3, 32, 1>}, {transform_indices = @transform_3, window_bounds = array<i64: 1, 32, 128>}]} {
    %c0 = arith.constant 0 : index
    %c0_0 = arith.constant 0 : index
    %c0_1 = arith.constant 0 : index
    %0 = vector.load %arg2[%c0, %c0_0, %c0_1] : memref<1x16x128xf32, #tpu.memory_space<vmem>>, vector<1x16x128xf32>
    %1 = vector.shape_cast %0 : vector<1x16x128xf32> to vector<16x128xf32>
    %c0_2 = arith.constant 0 : index
    %c0_3 = arith.constant 0 : index
    %2 = vector.load %arg3[%c0_2, %c0_3] : memref<32x16xf32, #tpu.memory_space<vmem>>, vector<32x16xf32>
    %cst = arith.constant dense<0.000000e+00> : vector<32x128xf32>
    %3 = tpu.matmul %2, %1, %cst {dimension_numbers = #tpu.dot_dimension_numbers<[1], [0], [0], [1], [0, 0, 1, 1], [], []>} : vector<32x16xf32>, vector<16x128xf32>, vector<32x128xf32> -> vector<32x128xf32>
    %c0_4 = arith.constant 0 : index
    %c0_5 = arith.constant 0 : index
    %c0_6 = arith.constant 0 : index
    %4 = vector.load %arg4[%c0_4, %c0_5, %c0_6] : memref<3x32x1xf32, #tpu.memory_space<vmem>>, vector<1x32x1xf32>
    %5 = vector.shape_cast %4 : vector<1x32x1xf32> to vector<32x1xf32>
    %6 = vector.broadcast %5 : vector<32x1xf32> to vector<32x128xf32>
    %7 = arith.addf %3, %6 : vector<32x128xf32>
    %cst_7 = arith.constant 0.000000e+00 : f32
    %8 = vector.broadcast %cst_7 : f32 to vector<32x128xf32>
    %9 = arith.maximumf %7, %8 : vector<32x128xf32>
    %10 = tpu.concatenate %1, %1 in 0 : vector<16x128xf32>, vector<16x128xf32> -> vector<32x128xf32>
    %c1 = arith.constant 1 : index
    %c0_8 = arith.constant 0 : index
    %c0_9 = arith.constant 0 : index
    %11 = vector.load %arg4[%c1, %c0_8, %c0_9] : memref<3x32x1xf32, #tpu.memory_space<vmem>>, vector<1x32x1xf32>
    %12 = vector.shape_cast %11 : vector<1x32x1xf32> to vector<32x1xf32>
    %13 = vector.broadcast %12 : vector<32x1xf32> to vector<32x128xf32>
    %14 = arith.mulf %10, %13 : vector<32x128xf32>
    %15 = arith.addf %9, %14 : vector<32x128xf32>
    %c2 = arith.constant 2 : index
    %c0_10 = arith.constant 0 : index
    %c0_11 = arith.constant 0 : index
    %16 = vector.load %arg4[%c2, %c0_10, %c0_11] : memref<3x32x1xf32, #tpu.memory_space<vmem>>, vector<1x32x1xf32>
    %17 = vector.shape_cast %16 : vector<1x32x1xf32> to vector<32x1xf32>
    %18 = vector.broadcast %17 : vector<32x1xf32> to vector<32x128xf32>
    %19 = arith.addf %15, %18 : vector<32x128xf32>
    %c0_12 = arith.constant 0 : index
    %c0_13 = arith.constant 0 : index
    %c0_14 = arith.constant 0 : index
    %20 = vector.load %arg5[%c0_12, %c0_13, %c0_14] : memref<1x32x128xf32, #tpu.memory_space<vmem>>, vector<1x32x128xf32>
    %21 = vector.shape_cast %20 : vector<1x32x128xf32> to vector<32x128xf32>
    %22 = vector.shape_cast %19 : vector<32x128xf32> to vector<1x32x128xf32>
    tpu.vector_store %arg5[%c0_12, %c0_13, %c0_14], %22 {strides = array<i32>} : memref<1x32x128xf32, #tpu.memory_space<vmem>>, vector<1x32x128xf32>,
    return
  }
  func.func @transform_0(%arg0: i32, %arg1: i32) -> (i32, i32, i32) {
    %c0_i32 = arith.constant 0 : i32
    %c0_i32_0 = arith.constant 0 : i32
    return %arg0, %c0_i32, %arg1 : i32, i32, i32
  }
  func.func @transform_1(%arg0: i32, %arg1: i32) -> (i32, i32) {
    %c0_i32 = arith.constant 0 : i32
    %c0_i32_0 = arith.constant 0 : i32
    %c0_i32_1 = arith.constant 0 : i32
    return %c0_i32, %c0_i32_0 : i32, i32
  }
  func.func @transform_2(%arg0: i32, %arg1: i32) -> (i32, i32, i32) {
    %c0_i32 = arith.constant 0 : i32
    %c0_i32_0 = arith.constant 0 : i32
    %c0_i32_1 = arith.constant 0 : i32
    %c0_i32_2 = arith.constant 0 : i32
    return %c0_i32, %c0_i32_0, %c0_i32_1 : i32, i32, i32
  }
  func.func @transform_3(%arg0: i32, %arg1: i32) -> (i32, i32, i32) {
    %c0_i32 = arith.constant 0 : i32
    %c0_i32_0 = arith.constant 0 : i32
    return %arg0, %c0_i32, %arg1 : i32, i32, i32
  }
}

</mosaic_0001>

<llo_original>
// kernel: tpu_custom_call.1
$region0: #{tpu_custom_call.1}
  #allocation0 [shape = 'u32[]', space=smem, size = 0x4, offset = 0x4, fixed_abs, tag = 'smem constant byte address 0x4 - core index']
  #allocation1 [shape = 'u32[144,128]{1,0:T(1,128)}', space=vmem, size = 0x12000, scoped, tag = 'internal scratch']
  %s0 = inlined_call_operand.vmem [shape: f32[2,16,200], index: 0, kind: input, shape index: {}]
  %s1 = inlined_call_operand.vmem [shape: f32[32,16], index: 1, kind: input, shape index: {}]
  %s2 = inlined_call_operand.vmem [shape: f32[3,32,1], index: 2, kind: input, shape index: {}]
  %s3 = inlined_call_operand.hbm [shape: f32[2,32,200], index: 3, kind: output, shape index: {}]
  %s4 = sld [smem:[#allocation0]]
  $region83: #{tpu_custom_call.1} parent=0
    _
  %s6 = ssub.s32 1, %s4
  %s7 = scalar_select 0, %s6, %s4
  $region1: #{tpu_custom_call.1} parent=0
    #allocation2 [shape = 'u8[16384]{0}', space=vmem, size = 0x4000, scoped, tag = 'input window, operand 0']
    #allocation3 [shape = 'u8[32768]{0}', space=vmem, size = 0x8000, scoped, tag = 'output window, operand 0']
    #allocation4 [shape = 's32[2]{0}', space=sflag, size = 0x8, scoped, tag = 'scoped memory for tpu_custom_call.1']
    %8 = vsyncpa [#allocation4], 0
    %s9 = scalar_lea.sflag [#allocation4], 1
    %10 = vsyncpa %s9, 0
    loop: start=0, step=1, limit=6
    $region2: #{tpu_custom_call.1} parent=1 // loop_pre_header
      _
    $region3: #{tpu_custom_call.1} parent=1 // loop_header
      %s12 = sphi 0, %s16
      %p13 = scmp.ge.s32.totalorder %s12, 6
      %s19 = sphi 0, %s31
      %s20 = sphi 0, %s27
      %s21 = sphi 0, %s19
      %s22 = sphi 0, %s20
      %s23 = sphi 0, %s21
      %s24 = sphi 0, %s22
      %s36 = sphi 0, %s38
      %s39 = sphi 0, %s36
      %s40 = sphi 0, %s39
      %s56 = sphi 0, %s40
      %s60 = sphi 0, %s60
      %s62 = sphi 0, %s60
      %s63 = sphi 0, %s62
      %s77 = sphi 0, %s63
      %s81 = sphi 0, %s81
      %s83 = sphi 0, %s81
      %s84 = sphi 0, %s83
      %s98 = sphi 0, %s84
      %s106 = sphi 0, %s108
      %s109 = sphi 0, %s106
      %s110 = sphi 0, %s109
      %s126 = sphi 0, %s110
    $region4: #{tpu_custom_call.1} parent=1 // loop_header_branch
      %15 = sbr.rel (%p13) target = $region8
    $region5: #{tpu_custom_call.1} parent=1 // loop_body
      %s17 = ssub.s32 %s12, 1
      %s18 = ssub.s32 %s12, 2
      %s25 = sadd.s32 1, %s20
      %p26 = scmp.ge.s32.totalorder %s25, 2
      %s27 = scalar_select %p26, 0, %s25
      %s28 = sadd.s32 1, %s19
      %s29 = scalar_select %p26, %s28, %s19
      %p30 = scmp.ge.s32.totalorder %s29, 2
      %s31 = scalar_select %p30, 0, %s29
      %s32 = ssub.s32 %s19, %s31
      %s33 = ssub.s32 %s20, %s27
      %s34 = sor.u32 %s32, %s33
      %p35 = scmp.eq.s32.totalorder %s34, 0
      %s37 = sadd.s32 %s36, 1
      %s38 = scalar_select %p35, %s36, %s37
      %p41 = pneg %p35
      %p42 = scmp.eq.s32.totalorder %s12, 3
      %p43 = por %p41, %p42
      %p44 = scmp.ne.s32.totalorder %s36, %s39
      %p45 = scmp.eq.s32.totalorder %s12, 0
      %p46 = por %p44, %p45
      %p47 = scmp.ne.s32.totalorder %s36, %s39
      %p48 = scmp.eq.s32.totalorder %s17, 3
      %p49 = por %p47, %p48
      %p50 = scmp.ne.s32.totalorder %s39, %s40
      %p51 = scmp.eq.s32.totalorder %s17, 0
      %p52 = por %p50, %p51
      %p53 = scmp.ne.s32.totalorder %s39, %s40
      %p54 = scmp.eq.s32.totalorder %s18, 3
      %p55 = por %p53, %p54
      %p57 = scmp.ne.s32.totalorder %s40, %s56
      %p58 = scmp.eq.s32.totalorder %s18, 0
      %p59 = por %p57, %p58
      %s61 = sadd.s32 %s60, 1
      %p64 = scmp.eq.s32.totalorder %s12, 3
      %p65 = scmp.ne.s32.totalorder %s60, %s62
      %p66 = scmp.eq.s32.totalorder %s12, 0
      %p67 = por %p65, %p66
      %p68 = scmp.ne.s32.totalorder %s60, %s62
      %p69 = scmp.eq.s32.totalorder %s17, 3
      %p70 = por %p68, %p69
      %p71 = scmp.ne.s32.totalorder %s62, %s63
      %p72 = scmp.eq.s32.totalorder %s17, 0
      %p73 = por %p71, %p72
      %p74 = scmp.ne.s32.totalorder %s62, %s63
      %p75 = scmp.eq.s32.totalorder %s18, 3
      %p76 = por %p74, %p75
      %p78 = scmp.ne.s32.totalorder %s63, %s77
      %p79 = scmp.eq.s32.totalorder %s18, 0
      %p80 = por %p78, %p79
      %s82 = sadd.s32 %s81, 1
      %p85 = scmp.eq.s32.totalorder %s12, 3
      %p86 = scmp.ne.s32.totalorder %s81, %s83
      %p87 = scmp.eq.s32.totalorder %s12, 0
      %p88 = por %p86, %p87
      %p89 = scmp.ne.s32.totalorder %s81, %s83
      %p90 = scmp.eq.s32.totalorder %s17, 3
      %p91 = por %p89, %p90
      %p92 = scmp.ne.s32.totalorder %s83, %s84
      %p93 = scmp.eq.s32.totalorder %s17, 0
      %p94 = por %p92, %p93
      %p95 = scmp.ne.s32.totalorder %s83, %s84
      %p96 = scmp.eq.s32.totalorder %s18, 3
      %p97 = por %p95, %p96
      %p99 = scmp.ne.s32.totalorder %s84, %s98
      %p100 = scmp.eq.s32.totalorder %s18, 0
      %p101 = por %p99, %p100
      %s102 = ssub.s32 %s19, %s31
      %s103 = ssub.s32 %s20, %s27
      %s104 = sor.u32 %s102, %s103
      %p105 = scmp.eq.s32.totalorder %s104, 0
      %s107 = sadd.s32 %s106, 1
      %s108 = scalar_select %p105, %s106, %s107
      %p111 = pneg %p105
      %p112 = scmp.eq.s32.totalorder %s12, 3
      %p113 = por %p111, %p112
      %p114 = scmp.ne.s32.totalorder %s106, %s109
      %p115 = scmp.eq.s32.totalorder %s12, 0
      %p116 = por %p114, %p115
      %p117 = scmp.ne.s32.totalorder %s106, %s109
      %p118 = scmp.eq.s32.totalorder %s17, 3
      %p119 = por %p117, %p118
      %p120 = scmp.ne.s32.totalorder %s109, %s110
      %p121 = scmp.eq.s32.totalorder %s17, 0
      %p122 = por %p120, %p121
      %p123 = scmp.ne.s32.totalorder %s109, %s110
      %p124 = scmp.eq.s32.totalorder %s18, 3
      %p125 = por %p123, %p124
      %p127 = scmp.ne.s32.totalorder %s110, %s126
      %p128 = scmp.eq.s32.totalorder %s18, 0
      %p129 = por %p127, %p128
      %p130 = scmp.le.s32.totalorder 1, %s12
      %p131 = scmp.lt.s32.totalorder %s12, 5
      %p132 = pnand %p130, %p131
      %p133 = pneg %p132
      // Predicated region
      $region9: #{tpu_custom_call.1} parent=5 // pred_check
        _
      $region10: #{tpu_custom_call.1} parent=5 // pred_check_branch
        %135 = sbr.rel (%p132) target = $region12
      $region11: #{tpu_custom_call.1} parent=5 // pred_region
        %s136 = ssub.s32 %s12, 1
        // Predicated region
        $region13: #{tpu_custom_call.1} parent=11 // pred_check
          %p137 = pneg %p73
        $region14: #{tpu_custom_call.1} parent=11 // pred_check_branch
          %139 = sbr.rel (%p137) target = $region16
        $region15: #{tpu_custom_call.1} parent=11 // pred_region
          _
        $region16: #{tpu_custom_call.1} parent=11 // pred_fallthru
          _
        // Predicated region
        $region17: #{tpu_custom_call.1} parent=11 // pred_check
          %p140 = pneg %p94
        $region18: #{tpu_custom_call.1} parent=11 // pred_check_branch
          %142 = sbr.rel (%p140) target = $region20
        $region19: #{tpu_custom_call.1} parent=11 // pred_region
          _
        $region20: #{tpu_custom_call.1} parent=11 // pred_fallthru
          _
      $region12: #{tpu_custom_call.1} parent=5 // pred_fallthru
        _
      %p143 = scmp.lt.s32.totalorder %s12, 4
      // Predicated region
      $region21: #{tpu_custom_call.1} parent=5 // pred_check
        %p144 = pneg %p143
      $region22: #{tpu_custom_call.1} parent=5 // pred_check_branch
        %146 = sbr.rel (%p144) target = $region24
      $region23: #{tpu_custom_call.1} parent=5 // pred_region
        // Predicated region
        $region25: #{tpu_custom_call.1} parent=23 // pred_check
          %p147 = pneg %p46
        $region26: #{tpu_custom_call.1} parent=23 // pred_check_branch
          %149 = sbr.rel (%p147) target = $region28
        $region27: #{tpu_custom_call.1} parent=23 // pred_region
          %s150 = sand.u32 %s36, 1
          %s151 = sand.u32 %s36, 1
          %s152 = smul.addr %s151, 16
          %s153 = scalar_lea.vmem [#allocation2], %s152
          %s154 = smul.addr %s19, 4
          %s155 = sadd.s32 %s20, %s154
          %s156 = smul.addr %s155, 8
          %s157 = scalar_lea.vmem %s0, %s156
          // Predicated region
          $region29: #{tpu_custom_call.1} parent=27 // pred_check
            _
          $region30: #{tpu_custom_call.1} parent=27 // pred_check_branch
            %159 = sbr.rel (0) target = $region32
          $region31: #{tpu_custom_call.1} parent=27 // pred_region
            // Predicated region
            $region33: #{tpu_custom_call.1} parent=31 // pred_check
              _
            $region34: #{tpu_custom_call.1} parent=31 // pred_check_branch
              %161 = sbr.rel (0) target = $region36
            $region35: #{tpu_custom_call.1} parent=31 // pred_region
              // Predicated region
              $region48: #{tpu_custom_call.1} parent=35 // pred_check
                _
              $region49: #{tpu_custom_call.1} parent=35 // pred_check_branch
                %178 = sbr.rel (0) target = $region51
              $region50: #{tpu_custom_call.1} parent=35 // pred_region
                loop: start=0, step=1, limit=1
                $region52: #{tpu_custom_call.1} parent=50 // loop_pre_header
                  _
                $region53: #{tpu_custom_call.1} parent=50 // loop_header
                  %s180 = sphi 0, %s184
                  %p181 = scmp.ge.s32.totalorder %s180, 1
                  %s185 = sphi %s157, %s157
                  %s186 = sphi %s153, %s153
                $region54: #{tpu_custom_call.1} parent=50 // loop_header_branch
                  %183 = sbr.rel (%p181) target = $region58
                $region55: #{tpu_custom_call.1} parent=50 // loop_body
                  %v187 = vld [vmem:[%s185] sm:$0xff]
                  %188 = vst [vmem:[%s186] sm:$0xff] %v187
                  %v189 = vld [vmem:[%s185 + $0x10] sm:$0xff]
                  %190 = vst [vmem:[%s186 + $0x8] sm:$0xff] %v189
                $region56: #{tpu_custom_call.1} parent=50 // loop_footer
                  %s184 = sadd.s32 1, %s180
                $region57: #{tpu_custom_call.1} parent=50 // loop_footer_branch
                  %179 = sbr.rel target = $region53
                $region58: #{tpu_custom_call.1} parent=50 // loop_exit
                  _
              $region51: #{tpu_custom_call.1} parent=35 // pred_fallthru
                _
              // Predicated region
              $region59: #{tpu_custom_call.1} parent=35 // pred_check
                _
              $region60: #{tpu_custom_call.1} parent=35 // pred_check_branch
                %192 = sbr.rel target = $region62
              $region61: #{tpu_custom_call.1} parent=35 // pred_region
                _
              $region62: #{tpu_custom_call.1} parent=35 // pred_fallthru
                _
            $region36: #{tpu_custom_call.1} parent=31 // pred_fallthru
              _
            // Predicated region
            $region37: #{tpu_custom_call.1} parent=31 // pred_check
              _
            $region38: #{tpu_custom_call.1} parent=31 // pred_check_branch
              %163 = sbr.rel target = $region40
            $region39: #{tpu_custom_call.1} parent=31 // pred_region
              loop: start=0, step=1, limit=1
              $region41: #{tpu_custom_call.1} parent=39 // loop_pre_header
                _
              $region42: #{tpu_custom_call.1} parent=39 // loop_header
                %s166 = sphi 0, %s170
                %p167 = scmp.ge.s32.totalorder %s166, 1
                %s171 = sphi %s157, %s157
                %s172 = sphi %s153, %s153
              $region43: #{tpu_custom_call.1} parent=39 // loop_header_branch
                %169 = sbr.rel (%p167) target = $region47
              $region44: #{tpu_custom_call.1} parent=39 // loop_body
                %v173 = vld [vmem:[%s171] sm:$0xff]
                %174 = vst [vmem:[%s172] sm:$0xff] %v173
                %v175 = vld [vmem:[%s171 + $0x10] sm:$0xff]
                %176 = vst [vmem:[%s172 + $0x8] sm:$0xff] %v175
              $region45: #{tpu_custom_call.1} parent=39 // loop_footer
                %s170 = sadd.s32 1, %s166
              $region46: #{tpu_custom_call.1} parent=39 // loop_footer_branch
                %165 = sbr.rel target = $region42
              $region47: #{tpu_custom_call.1} parent=39 // loop_exit
                _
            $region40: #{tpu_custom_call.1} parent=31 // pred_fallthru
              _
          $region32: #{tpu_custom_call.1} parent=27 // pred_fallthru
            _
          %193 = vnop
        $region28: #{tpu_custom_call.1} parent=23 // pred_fallthru
          _
      $region24: #{tpu_custom_call.1} parent=5 // pred_fallthru
        _
      %p194 = scmp.le.s32.totalorder 1, %s12
      %p195 = scmp.lt.s32.totalorder %s12, 5
      %p196 = pnand %p194, %p195
      %p197 = pneg %p196
      // Predicated region
      $region63: #{tpu_custom_call.1} parent=5 // pred_check
        _
      $region64: #{tpu_custom_call.1} parent=5 // pred_check_branch
        %199 = sbr.rel (%p196) target = $region66
      $region65: #{tpu_custom_call.1} parent=5 // pred_region
        %s200 = ssub.s32 %s12, 1
        %s201 = sand.u32 %s39, 1
        %s202 = sand.u32 %s39, 1
        %s203 = smul.addr %s202, 16
        %s204 = scalar_lea.vmem [#allocation2], %s203
        // Predicated region
        $region67: #{tpu_custom_call.1} parent=65 // pred_check
          %p205 = pneg %p52
        $region68: #{tpu_custom_call.1} parent=65 // pred_check_branch
          %207 = sbr.rel (%p205) target = $region70
        $region69: #{tpu_custom_call.1} parent=65 // pred_region
          _
        $region70: #{tpu_custom_call.1} parent=65 // pred_fallthru
          _
        %s208 = sand.u32 %s39, 1
        %s209 = sand.u32 %s39, 1
        %s210 = smul.addr %s209, 16
        %s211 = scalar_lea.vmem [#allocation2], %s210
        %p212 = pneg %p52
        %p213 = pneg %p49
        %p214 = pneg %p73
        %p215 = pneg %p70
        %p216 = pneg %p94
        %p217 = pneg %p91
        %p218 = pneg %p122
        %p219 = pneg %p119
        %s220 = sand.u32 %s109, 1
        %s221 = scalar_lea.sflag [#allocation4], %s220
        %s222 = sand.u32 %s109, 1
        %s223 = smul.addr %s222, 32
        %s224 = scalar_lea.vmem [#allocation3], %s223
        %v225 = vld [vmem:[%s204] sm:$0xff]
        %v226 = vld [vmem:[%s204 + $0x8] sm:$0xff]
        %v227 = vld [vmem:[%s1] sm:$0xff]
        %v228 = vld [vmem:[%s1 + $0x8] sm:$0xff]
        %v229 = vld [vmem:[%s1 + $0x10] sm:$0xff]
        %v230 = vld [vmem:[%s1 + $0x18] sm:$0xff]
        %v231 = vld [vmem:[%s2] sm:$0xff]
        %v232 = vld [vmem:[%s2 + $0x8] sm:$0xff]
        %v233 = vld [vmem:[%s2 + $0x10] sm:$0xff]
        %v234 = vld [vmem:[%s2 + $0x18] sm:$0xff]
        %236 = vset.pattern.permute.xlu0 0
        %237 = vperm.xlu0 %236, %v231
        %v238 = vpop.permute.xlu0 %237
        %241 = vset.pattern.permute.xlu0 0
        %242 = vperm.xlu0 %241, %v232
        %v243 = vpop.permute.xlu0 %242
        %246 = vset.pattern.permute.xlu0 0
        %247 = vperm.xlu0 %246, %v233
        %v248 = vpop.permute.xlu0 %247
        %251 = vset.pattern.permute.xlu0 0
        %252 = vperm.xlu0 %251, %v234
        %v253 = vpop.permute.xlu0 %252
        %vm255 = vcmask 130048
        %v257 = vsel %vm255, %v227, 0
        %v260 = vsel %vm255, %v228, 0
        %v263 = vsel %vm255, %v229, 0
        %v266 = vsel %vm255, %v230, 0
        %268 = vmatprep.subr.mxu0 0.0
        %269 = vmatpush1.msra.mxu0 %v225
        %270 = vmatprep.subr.mxu0 0.0
        %271 = vmatpush1.msra.mxu0 %v226
        %272 = vmatprep.subr.mxu0 0.0
        %273 = vmatpush1.msra.mxu0 0.0
        %274 = vmatprep.subr.mxu0 0.0
        %275 = vmatpush1.msra.mxu0 0.0
        %276 = vmatprep.subr.mxu0 0.0
        %277 = vmatpush1.msra.mxu0 0.0
        %278 = vmatprep.subr.mxu0 0.0
        %279 = vmatpush1.msra.mxu0 0.0
        %280 = vmatprep.subr.mxu0 0.0
        %281 = vmatpush1.msra.mxu0 0.0
        %282 = vmatprep.subr.mxu0 0.0
        %283 = vmatpush1.msra.mxu0 0.0
        %284 = vmatprep.subr.mxu0 0.0
        %285 = vmatpush1.msra.mxu0 0.0
        %286 = vmatprep.subr.mxu0 0.0
        %287 = vmatpush1.msra.mxu0 0.0
        %288 = vmatprep.subr.mxu0 0.0
        %289 = vmatpush1.msra.mxu0 0.0
        %290 = vmatprep.subr.mxu0 0.0
        %291 = vmatpush1.msra.mxu0 0.0
        %292 = vmatprep.subr.mxu0 0.0
        %293 = vmatpush1.msra.mxu0 0.0
        %294 = vmatprep.subr.mxu0 0.0
        %295 = vmatpush1.msra.mxu0 0.0
        %296 = vmatprep.subr.mxu0 0.0
        %297 = vmatpush1.msra.mxu0 0.0
        %298 = vmatprep.subr.mxu0 0.0
        %299 = vmatpush1.msra.mxu0 0.0
        %300 = vmatprep.subr.mxu0 0.0
        %301 = vmatpush1.msra.mxu0 0.0
        %302 = vmatprep.subr.mxu0 0.0
        %303 = vmatpush1.msra.mxu0 0.0
        %304 = vmatprep.subr.mxu0 0.0
        %305 = vmatpush1.msra.mxu0 0.0
        %306 = vmatprep.subr.mxu0 0.0
        %307 = vmatpush1.msra.mxu0 0.0
        %308 = vmatprep.subr.mxu0 0.0
        %309 = vmatpush1.msra.mxu0 0.0
        %310 = vmatprep.subr.mxu0 0.0
        %311 = vmatpush1.msra.mxu0 0.0
        %312 = vmatprep.subr.mxu0 0.0
        %313 = vmatpush1.msra.mxu0 0.0
        %314 = vmatprep.subr.mxu0 0.0
        %315 = vmatpush1.msra.mxu0 0.0
        %316 = vmatprep.subr.mxu0 0.0
        %317 = vmatpush1.msra.mxu0 0.0
        %318 = vmatprep.subr.mxu0 0.0
        %319 = vmatpush1.msra.mxu0 0.0
        %320 = vmatprep.subr.mxu0 0.0
        %321 = vmatpush1.msra.mxu0 0.0
        %322 = vmatprep.subr.mxu0 0.0
        %323 = vmatpush1.msra.mxu0 0.0
        %324 = vmatprep.subr.mxu0 0.0
        %325 = vmatpush1.msra.mxu0 0.0
        %326 = vmatprep.subr.mxu0 0.0
        %327 = vmatpush1.msra.mxu0 0.0
        %328 = vmatprep.subr.mxu0 0.0
        %329 = vmatpush1.msra.mxu0 0.0
        %330 = vmatprep.subr.mxu0 0.0
        %331 = vmatpush1.msra.mxu0 0.0
        %332 = vmatprep.mubr.f32.mxu0 0.0
        %333 = vmatmul.mubr.f32.gmra.mrb[0].mxu0 %v257
        %v334 = vpop.f32.mrb[0].mxu0
        %v335 = vadd.f32 %v238, %v334
        %v336 = vpop.f32.mrb[0].mxu0
        %337 = vmatprep.mubr.f32.mxu0 0.0
        %338 = vmatmul.mubr.f32.gmra.mrb[0].mxu0 %v260
        %v339 = vpop.f32.mrb[0].mxu0
        %v340 = vadd.f32 %v243, %v339
        %v341 = vpop.f32.mrb[0].mxu0
        %342 = vmatprep.mubr.f32.mxu0 0.0
        %343 = vmatmul.mubr.f32.gmra.mrb[0].mxu0 %v263
        %v344 = vpop.f32.mrb[0].mxu0
        %v345 = vadd.f32 %v248, %v344
        %v346 = vpop.f32.mrb[0].mxu0
        %347 = vmatprep.mubr.f32.mxu0 0.0
        %348 = vmatmul.mubr.f32.gmra.mrb[0].mxu0 %v266
        %v349 = vpop.f32.mrb[0].mxu0
        %v350 = vadd.f32 %v253, %v349
        %v351 = vpop.f32.mrb[0].mxu0
        %352 = vdwg.mxu0
        %v353 = vmax.f32 %v335, 0.0
        %v354 = vmax.f32 %v340, 0.0
        %v355 = vmax.f32 %v345, 0.0
        %v356 = vmax.f32 %v350, 0.0
        %s357 = scalar_lea.vmem %s2, 32
        %v358 = vld [vmem:[%s357] sm:$0xff]
        %v359 = vld [vmem:[%s357 + $0x8] sm:$0xff]
        %v360 = vld [vmem:[%s357 + $0x10] sm:$0xff]
        %v361 = vld [vmem:[%s357 + $0x18] sm:$0xff]
        %363 = vset.pattern.permute.xlu0 0
        %364 = vperm.xlu0 %363, %v358
        %v365 = vpop.permute.xlu0 %364
        %368 = vset.pattern.permute.xlu0 0
        %369 = vperm.xlu0 %368, %v359
        %v370 = vpop.permute.xlu0 %369
        %373 = vset.pattern.permute.xlu0 0
        %374 = vperm.xlu0 %373, %v360
        %v375 = vpop.permute.xlu0 %374
        %378 = vset.pattern.permute.xlu0 0
        %379 = vperm.xlu0 %378, %v361
        %v380 = vpop.permute.xlu0 %379
        %v382 = vmul.f32 %v225, %v365
        %v383 = vmul.f32 %v226, %v370
        %v384 = vmul.f32 %v225, %v375
        %v385 = vmul.f32 %v226, %v380
        %v386 = vadd.f32 %v353, %v382
        %v387 = vadd.f32 %v354, %v383
        %v388 = vadd.f32 %v355, %v384
        %v389 = vadd.f32 %v356, %v385
        %s390 = scalar_lea.vmem %s2, 64
        %v391 = vld [vmem:[%s390] sm:$0xff]
        %v392 = vld [vmem:[%s390 + $0x8] sm:$0xff]
        %v393 = vld [vmem:[%s390 + $0x10] sm:$0xff]
        %v394 = vld [vmem:[%s390 + $0x18] sm:$0xff]
        %396 = vset.pattern.permute.xlu0 0
        %397 = vperm.xlu0 %396, %v391
        %v398 = vpop.permute.xlu0 %397
        %401 = vset.pattern.permute.xlu0 0
        %402 = vperm.xlu0 %401, %v392
        %v403 = vpop.permute.xlu0 %402
        %406 = vset.pattern.permute.xlu0 0
        %407 = vperm.xlu0 %406, %v393
        %v408 = vpop.permute.xlu0 %407
        %411 = vset.pattern.permute.xlu0 0
        %412 = vperm.xlu0 %411, %v394
        %v413 = vpop.permute.xlu0 %412
        %v415 = vadd.f32 %v386, %v398
        %v416 = vadd.f32 %v387, %v403
        %v417 = vadd.f32 %v388, %v408
        %v418 = vadd.f32 %v389, %v413
        %419 = vst [vmem:[%s224] sm:$0xff] %v415
        %420 = vst [vmem:[%s224 + $0x8] sm:$0xff] %v416
        %421 = vst [vmem:[%s224 + $0x10] sm:$0xff] %v417
        %422 = vst [vmem:[%s224 + $0x18] sm:$0xff] %v418
        %s423 = sand.u32 %s109, 1
        %s424 = scalar_lea.sflag [#allocation4], %s423
        %s425 = sand.u32 %s109, 1
        %s426 = smul.addr %s425, 32
        %s427 = scalar_lea.vmem [#allocation3], %s426
        // Predicated region
        $region71: #{tpu_custom_call.1} parent=65 // pred_check
          %p428 = pneg %p119
        $region72: #{tpu_custom_call.1} parent=65 // pred_check_branch
          %430 = sbr.rel (%p428) target = $region74
        $region73: #{tpu_custom_call.1} parent=65 // pred_region
          %s432 = ssub.s32 512, 512
          %433 = vsyncadd %s424, %s432
          %s434 = smul.addr %s21, 8
          %s435 = sadd.s32 %s22, %s434
          %s436 = smul.addr %s435, 128
          %s437 = scalar_lea.hbm %s3, %s436
          %s438 = sshll.u32 %s427, 4
          %s439 = int_to_ptr.vmem [resolvable:$true] %s438
          %444 = dma.vmem_to_hbm [thread:$0]  %s439, 512, %s437, %s424, 128, 256, 8
        $region74: #{tpu_custom_call.1} parent=65 // pred_fallthru
          _
      $region66: #{tpu_custom_call.1} parent=5 // pred_fallthru
        _
      %p445 = scmp.le.s32.totalorder 2, %s12
      // Predicated region
      $region75: #{tpu_custom_call.1} parent=5 // pred_check
        %p446 = pneg %p445
      $region76: #{tpu_custom_call.1} parent=5 // pred_check_branch
        %448 = sbr.rel (%p446) target = $region78
      $region77: #{tpu_custom_call.1} parent=5 // pred_region
        %s449 = ssub.s32 %s12, 2
        // Predicated region
        $region79: #{tpu_custom_call.1} parent=77 // pred_check
          %p450 = pneg %p125
        $region80: #{tpu_custom_call.1} parent=77 // pred_check_branch
          %452 = sbr.rel (%p450) target = $region82
        $region81: #{tpu_custom_call.1} parent=77 // pred_region
          %s453 = sand.u32 %s110, 1
          %s454 = scalar_lea.sflag [#allocation4], %s453
          %s455 = sand.u32 %s110, 1
          %s456 = smul.addr %s455, 32
          %s457 = scalar_lea.vmem [#allocation3], %s456
          %458 = dma.done %s454, 512
        $region82: #{tpu_custom_call.1} parent=77 // pred_fallthru
          _
      $region78: #{tpu_custom_call.1} parent=5 // pred_fallthru
        _
    $region6: #{tpu_custom_call.1} parent=1 // loop_footer
      %s16 = sadd.s32 1, %s12
    $region7: #{tpu_custom_call.1} parent=1 // loop_footer_branch
      %11 = sbr.rel target = $region3
    $region8: #{tpu_custom_call.1} parent=1 // loop_exit
      _
    %459 = vsyncpa [#allocation4], 1
    %s460 = scalar_lea.sflag [#allocation4], 1
    %461 = vsyncpa %s460, 1

</llo_original>
